<compile_context>
chip_gen: v5e
topology: v5e:2x2
jax: 0.10.0
libtpu: 0.0.40
codegen_flags: <defaults>
</compile_context>

<pallas_src>
import jax
import jax.numpy as jnp
from jax.experimental import pallas as pl
from jax.experimental.pallas import tpu as pltpu


def _round_up(x, m):
    return ((x + m - 1) // m) * m


# ----------------------------------------------------------------------------
# Fused kernel: multi-hot (gather+Linear1) -> ReLU -> Linear2 -> ReLU -> head
# ----------------------------------------------------------------------------
def _make_embed_mlp_kernel(n_emb, offsets, sum_vp):
    """Ref order: cate, num, fused_table, w1_num, b1, w2, b2, w3t, b3,
    hidden_out, y_out."""

    def kernel(cate_ref, num_ref, ft_ref, wnum_ref, b1_ref, w2_ref, b2_ref,
               w3t_ref, b3_ref, hid_ref, y_ref):
        tb = num_ref.shape[0]
        cate = cate_ref[...]                                  # [TB, n_emb] i32

        # Multi-hot over the stacked (padded) vocab: one iota, n_emb compares.
        iota = jax.lax.broadcasted_iota(jnp.int32, (tb, sum_vp), 1)
        multihot = jnp.zeros((tb, sum_vp), jnp.float32)
        for j in range(n_emb):
            ids = cate[:, j:j + 1] + offsets[j]               # [TB, 1]
            multihot = multihot + (iota == ids).astype(jnp.float32)

        # First layer: tables are pre-folded into W1 segments on the host.
        acc = jnp.dot(multihot, ft_ref[...],
                      preferred_element_type=jnp.float32)     # [TB, 64]
        acc = acc + jnp.dot(num_ref[...], wnum_ref[...],
                            preferred_element_type=jnp.float32)
        h1 = jnp.maximum(acc + b1_ref[...], 0.0)              # [TB, 64]

        h2 = jnp.maximum(
            jnp.dot(h1, w2_ref[...], preferred_element_type=jnp.float32)
            + b2_ref[...], 0.0)                               # [TB, 32]
        hid_ref[...] = h2.astype(hid_ref.dtype)

        # Output head: VPU mul + lane reduce (avoids an N=1 MXU pass).
        y = jnp.sum(h2 * w3t_ref[...], axis=-1, keepdims=True) + b3_ref[...]
        y_ref[...] = y.astype(y_ref.dtype)

    return kernel


# ----------------------------------------------------------------------------
# Wrapper
# ----------------------------------------------------------------------------
def embed_nn_forward(cate_inputs, num_inputs, tables, w1, b1, w2, b2, w3, b3,
                     *, block_b=2048):
    """Returns (out [B,1], hidden_rep [B,32])."""
    B = int(num_inputs.shape[0])
    n_emb = len(tables)
    emb_dims = [int(t.shape[1]) for t in tables]
    num_dim = int(num_inputs.shape[1])
    h1_dim = int(w1.shape[1])
    h2_dim = int(w2.shape[1])

    cate_inputs = cate_inputs.astype(jnp.int32)
    num_inputs = num_inputs.astype(jnp.float32)
    w1 = w1.astype(jnp.float32)

    # Fold each table into its W1 row-segment and stack:
    #   fused_table[offset_j : offset_j+vp_j, :] = pad(table_j) @ W1_j
    # Padded vocab rows are zero rows -> zero contribution if ever selected.
    fused_parts, offsets, off_rows, off_cols = [], [], 0, 0
    for j, t in enumerate(tables):
        v = int(t.shape[0])
        d = emb_dims[j]
        vp = _round_up(v, 8)
        t_p = jnp.pad(t.astype(jnp.float32), ((0, vp - v), (0, 0)))
        w1_j = w1[off_cols:off_cols + d, :]                   # [d, 64]
        fused_parts.append(t_p @ w1_j)                        # [vp, 64]
        offsets.append(off_rows)
        off_rows += vp
        off_cols += d
    sum_vp = off_rows
    fused_table = jnp.concatenate(fused_parts, axis=0)        # [sum_vp, 64]
    w1_num = w1[off_cols:off_cols + num_dim, :]               # [num_dim, 64]

    w3t = w3.astype(jnp.float32).reshape(1, h2_dim)           # [1, 32]
    b3r = b3.astype(jnp.float32).reshape(1, 1)                # [1, 1]

    # Batch tiling: TB multiple of 8; keep >= 2 grid steps when possible so
    # both v7x TensorCores get work under dimension_semantics=("parallel",).
    TB = _round_up(min(int(block_b), _round_up(B, 8)), 8)
    B_pad = _round_up(B, TB)
    if B_pad // TB < 2 and B_pad >= 16:
        TB = max(8, _round_up(B_pad // 2, 8))
        B_pad = _round_up(B, TB)
    if B_pad != B:
        cate_inputs = jnp.pad(cate_inputs, ((0, B_pad - B), (0, 0)))
        num_inputs = jnp.pad(num_inputs, ((0, B_pad - B), (0, 0)))

    grid = (B_pad // TB,)

    def full(shape):
        return pl.BlockSpec(shape, lambda i: (0,) * len(shape))

    in_specs = [
        pl.BlockSpec((TB, n_emb), lambda i: (i, 0)),          # cate
        pl.BlockSpec((TB, num_dim), lambda i: (i, 0)),        # num
        full((sum_vp, h1_dim)),                               # fused table
        full((num_dim, h1_dim)),                              # w1 (numeric rows)
        full((1, h1_dim)),                                    # b1
        full((h1_dim, h2_dim)),                               # w2
        full((1, h2_dim)),                                    # b2
        full((1, h2_dim)),                                    # w3^T
        full((1, 1)),                                         # b3
    ]
    out_specs = [
        pl.BlockSpec((TB, h2_dim), lambda i: (i, 0)),         # hidden_rep
        pl.BlockSpec((TB, 1), lambda i: (i, 0)),              # y
    ]

    kernel = _make_embed_mlp_kernel(n_emb, tuple(offsets), sum_vp)
    hidden_pad, y_pad = pl.pallas_call(
        kernel,
        grid_spec=pltpu.PrefetchScalarGridSpec(
            num_scalar_prefetch=0,
            grid=grid,
            in_specs=in_specs,
            out_specs=out_specs,
        ),
        out_shape=(
            jax.ShapeDtypeStruct((B_pad, h2_dim), jnp.float32),
            jax.ShapeDtypeStruct((B_pad, 1), jnp.float32),
        ),
        compiler_params=pltpu.CompilerParams(
            dimension_semantics=("parallel",),
            vmem_limit_bytes=32 * 1024 * 1024),
    )(cate_inputs, num_inputs, fused_table, w1_num,
      b1.astype(jnp.float32), w2.astype(jnp.float32),
      b2.astype(jnp.float32), w3t, b3r)

    return y_pad[:B], hidden_pad[:B]


# ----------------------------------------------------------------------------
# embed_nn module (deterministic in-script parameters)
# ----------------------------------------------------------------------------
class EmbedNN:
    # TODO(synk): embedding_file / embedding_dict loading (pickle I/O) is an
    # init-time path, not a forward op; omitted here.
    def __init__(self, embedding_input, embedding_dim, num_dim, key,
                 block_b=2048):
        keys = jax.random.split(key, len(embedding_input) + 6)
        self.embedding_dim = list(embedding_dim)
        self.block_b = block_b
        self.tables = [
            jax.random.normal(keys[i], (embedding_input[i], embedding_dim[i]),
                              dtype=jnp.float32)
            for i in range(len(embedding_input))
        ]
        input_dim = int(sum(embedding_dim)) + num_dim

        def linear_init(kw, kb, fan_in, fan_out):
            bound = 1.0 / float(fan_in) ** 0.5
            w = jax.random.uniform(kw, (fan_in, fan_out), jnp.float32,
                                   -bound, bound)
            b = jax.random.uniform(kb, (1, fan_out), jnp.float32, -bound, bound)
            return w, b

        k = len(embedding_input)
        self.w1, self.b1 = linear_init(keys[k + 0], keys[k + 1], input_dim, 64)
        self.w2, self.b2 = linear_init(keys[k + 2], keys[k + 3], 64, 32)
        self.w3, self.b3 = linear_init(keys[k + 4], keys[k + 5], 32, 1)
        self.hidden_rep = None

    def __call__(self, cate_inputs, num_inputs):
        out, hidden = embed_nn_forward(
            cate_inputs, num_inputs, self.tables,
            self.w1, self.b1, self.w2, self.b2, self.w3, self.b3,
            block_b=self.block_b)
        self.hidden_rep = hidden
        return out


# ----------------------------------------------------------------------------
# Pure-JAX reference for correctness check
# ----------------------------------------------------------------------------
def reference_forward(model, cate_inputs, num_inputs):
    embeddings = [jnp.take(model.tables[i], cate_inputs[:, i], axis=0)
                  for i in range(len(model.tables))]
    x = jnp.concatenate(embeddings + [num_inputs], axis=1).astype(jnp.float32)
    h1 = jnp.maximum(x @ model.w1 + model.b1, 0.0)
    h2 = jnp.maximum(h1 @ model.w2 + model.b2, 0.0)
    return h2 @ model.w3 + model.b3, h2


if __name__ == "__main__":
    key = jax.random.PRNGKey(0)
    k_model, k_cat, k_num = jax.random.split(key, 3)

    embedding_input = [11, 7, 5]     # vocab sizes
    embedding_dim = [4, 8, 4]        # sum = 16
    num_dim = 16                     # -> MLP input_dim = 32
    batch = 12                       # not a tile multiple -> exercises padding

    model = EmbedNN(embedding_input, embedding_dim, num_dim, k_model)

    cate_inputs = jnp.stack(
        [jax.random.randint(jax.random.fold_in(k_cat, i), (batch,), 0,
                            embedding_input[i])
         for i in range(len(embedding_input))], axis=1).astype(jnp.int32)
    num_inputs = jax.random.normal(k_num, (batch, num_dim), jnp.float32)

    # Default block_b path (TB clamp gives a 2-step batch grid here).
    out = model(cate_inputs, num_inputs)
    out = jax.block_until_ready(out)

    ref_out, ref_hidden = reference_forward(model, cate_inputs, num_inputs)
    assert out.shape == (batch, 1)
    assert model.hidden_rep.shape == (batch, 32)
    assert jnp.allclose(out, ref_out, atol=1e-4, rtol=1e-4)
    assert jnp.allclose(model.hidden_rep, ref_hidden, atol=1e-4, rtol=1e-4)

    # Small explicit tile path (block_b=8) to exercise multi-step grid + pad.
    out2, hid2 = embed_nn_forward(
        cate_inputs, num_inputs, model.tables,
        model.w1, model.b1, model.w2, model.b2, model.w3, model.b3,
        block_b=8)
    out2 = jax.block_until_ready(out2)
    assert jnp.allclose(out2, ref_out, atol=1e-4, rtol=1e-4)
    assert jnp.allclose(hid2, ref_hidden, atol=1e-4, rtol=1e-4)

    print("KERNEL_OK")
</pallas_src>

<mosaic_0001>
module attributes {stable_mosaic.version = 11 : i64} {
  func.func @kernel(%arg0: i32, %arg1: memref<8x3xi32, #tpu.memory_space<vmem>>, %arg2: memref<8x16xf32, #tpu.memory_space<vmem>>, %arg3: memref<32x64xf32, #tpu.memory_space<vmem>>, %arg4: memref<16x64xf32, #tpu.memory_space<vmem>>, %arg5: memref<1x64xf32, #tpu.memory_space<vmem>>, %arg6: memref<64x32xf32, #tpu.memory_space<vmem>>, %arg7: memref<1x32xf32, #tpu.memory_space<vmem>>, %arg8: memref<1x32xf32, #tpu.memory_space<vmem>>, %arg9: memref<1x1xf32, #tpu.memory_space<vmem>>, %arg10: memref<8x32xf32, #tpu.memory_space<vmem>>, %arg11: memref<8x1xf32, #tpu.memory_space<vmem>>) attributes {dimension_semantics = [#tpu.dimension_semantics<parallel>], iteration_bounds = array<i64: 2>, scalar_prefetch = 0 : i64, scratch_operands = 0 : i64, tpu.core_type = #tpu.core_type<tc>, window_params = [{transform_indices = @transform_0, window_bounds = array<i64: 8, 3>}, {transform_indices = @transform_1, window_bounds = array<i64: 8, 16>}, {pipeline_mode = #tpu.pipeline_mode<synchronous>, transform_indices = @transform_2, window_bounds = array<i64: 32, 64>}, {pipeline_mode = #tpu.pipeline_mode<synchronous>, transform_indices = @transform_3, window_bounds = array<i64: 16, 64>}, {pipeline_mode = #tpu.pipeline_mode<synchronous>, transform_indices = @transform_4, window_bounds = array<i64: 1, 64>}, {pipeline_mode = #tpu.pipeline_mode<synchronous>, transform_indices = @transform_5, window_bounds = array<i64: 64, 32>}, {pipeline_mode = #tpu.pipeline_mode<synchronous>, transform_indices = @transform_6, window_bounds = array<i64: 1, 32>}, {pipeline_mode = #tpu.pipeline_mode<synchronous>, transform_indices = @transform_7, window_bounds = array<i64: 1, 32>}, {pipeline_mode = #tpu.pipeline_mode<synchronous>, transform_indices = @transform_8, window_bounds = array<i64: 1, 1>}, {transform_indices = @transform_9, window_bounds = array<i64: 8, 32>}, {transform_indices = @transform_10, window_bounds = array<i64: 8, 1>}]} {
    %c0 = arith.constant 0 : index
    %c0_0 = arith.constant 0 : index
    %0 = vector.load %arg1[%c0, %c0_0] : memref<8x3xi32, #tpu.memory_space<vmem>>, vector<8x3xi32>
    %1 = tpu.iota {dimensions = array<i32: 1>} : vector<8x32xi32>
    %cst = arith.constant 0.000000e+00 : f32
    %2 = vector.broadcast %cst : f32 to vector<8x32xf32>
    %3 = vector.extract_strided_slice %0 {offsets = [0, 0], sizes = [8, 1], strides = [1, 1]} : vector<8x3xi32> to vector<8x1xi32>
    %c0_i32 = arith.constant 0 : i32
    %4 = vector.broadcast %c0_i32 : i32 to vector<8x1xi32>
    %5 = arith.addi %3, %4 : vector<8x1xi32>
    %6 = vector.broadcast %5 : vector<8x1xi32> to vector<8x32xi32>
    %7 = arith.cmpi eq, %1, %6 : vector<8x32xi32>
    %8 = arith.extui %7 : vector<8x32xi1> to vector<8x32xi32>
    %9 = arith.sitofp %8 : vector<8x32xi32> to vector<8x32xf32>
    %10 = arith.addf %2, %9 : vector<8x32xf32>
    %11 = vector.extract_strided_slice %0 {offsets = [0, 1], sizes = [8, 1], strides = [1, 1]} : vector<8x3xi32> to vector<8x1xi32>
    %c16_i32 = arith.constant 16 : i32
    %12 = vector.broadcast %c16_i32 : i32 to vector<8x1xi32>
    %13 = arith.addi %11, %12 : vector<8x1xi32>
    %14 = vector.broadcast %13 : vector<8x1xi32> to vector<8x32xi32>
    %15 = arith.cmpi eq, %1, %14 : vector<8x32xi32>
    %16 = arith.extui %15 : vector<8x32xi1> to vector<8x32xi32>
    %17 = arith.sitofp %16 : vector<8x32xi32> to vector<8x32xf32>
    %18 = arith.addf %10, %17 : vector<8x32xf32>
    %19 = vector.extract_strided_slice %0 {offsets = [0, 2], sizes = [8, 1], strides = [1, 1]} : vector<8x3xi32> to vector<8x1xi32>
    %c24_i32 = arith.constant 24 : i32
    %20 = vector.broadcast %c24_i32 : i32 to vector<8x1xi32>
    %21 = arith.addi %19, %20 : vector<8x1xi32>
    %22 = vector.broadcast %21 : vector<8x1xi32> to vector<8x32xi32>
    %23 = arith.cmpi eq, %1, %22 : vector<8x32xi32>
    %24 = arith.extui %23 : vector<8x32xi1> to vector<8x32xi32>
    %25 = arith.sitofp %24 : vector<8x32xi32> to vector<8x32xf32>
    %26 = arith.addf %18, %25 : vector<8x32xf32>
    %c0_1 = arith.constant 0 : index
    %c0_2 = arith.constant 0 : index
    %27 = vector.load %arg3[%c0_1, %c0_2] : memref<32x64xf32, #tpu.memory_space<vmem>>, vector<32x64xf32>
    %cst_3 = arith.constant dense<0.000000e+00> : vector<8x64xf32>
    %28 = tpu.matmul %26, %27, %cst_3 {dimension_numbers = #tpu.dot_dimension_numbers<[1], [0], [0], [1], [0, 0, 1, 1], [], []>} : vector<8x32xf32>, vector<32x64xf32>, vector<8x64xf32> -> vector<8x64xf32>
    %c0_4 = arith.constant 0 : index
    %c0_5 = arith.constant 0 : index
    %29 = vector.load %arg2[%c0_4, %c0_5] : memref<8x16xf32, #tpu.memory_space<vmem>>, vector<8x16xf32>
    %c0_6 = arith.constant 0 : index
    %c0_7 = arith.constant 0 : index
    %30 = vector.load %arg4[%c0_6, %c0_7] : memref<16x64xf32, #tpu.memory_space<vmem>>, vector<16x64xf32>
    %cst_8 = arith.constant dense<0.000000e+00> : vector<8x64xf32>
    %31 = tpu.matmul %29, %30, %cst_8 {dimension_numbers = #tpu.dot_dimension_numbers<[1], [0], [0], [1], [0, 0, 1, 1], [], []>} : vector<8x16xf32>, vector<16x64xf32>, vector<8x64xf32> -> vector<8x64xf32>
    %32 = arith.addf %28, %31 : vector<8x64xf32>
    %c0_9 = arith.constant 0 : index
    %c0_10 = arith.constant 0 : index
    %33 = vector.load %arg5[%c0_9, %c0_10] : memref<1x64xf32, #tpu.memory_space<vmem>>, vector<1x64xf32>
    %34 = vector.broadcast %33 : vector<1x64xf32> to vector<8x64xf32>
    %35 = arith.addf %32, %34 : vector<8x64xf32>
    %cst_11 = arith.constant 0.000000e+00 : f32
    %36 = vector.broadcast %cst_11 : f32 to vector<8x64xf32>
    %37 = arith.maximumf %35, %36 : vector<8x64xf32>
    %c0_12 = arith.constant 0 : index
    %c0_13 = arith.constant 0 : index
    %38 = vector.load %arg6[%c0_12, %c0_13] : memref<64x32xf32, #tpu.memory_space<vmem>>, vector<64x32xf32>
    %cst_14 = arith.constant dense<0.000000e+00> : vector<8x32xf32>
    %39 = tpu.matmul %37, %38, %cst_14 {dimension_numbers = #tpu.dot_dimension_numbers<[1], [0], [0], [1], [0, 0, 1, 1], [], []>} : vector<8x64xf32>, vector<64x32xf32>, vector<8x32xf32> -> vector<8x32xf32>
    %c0_15 = arith.constant 0 : index
    %c0_16 = arith.constant 0 : index
    %40 = vector.load %arg7[%c0_15, %c0_16] : memref<1x32xf32, #tpu.memory_space<vmem>>, vector<1x32xf32>
    %41 = vector.broadcast %40 : vector<1x32xf32> to vector<8x32xf32>
    %42 = arith.addf %39, %41 : vector<8x32xf32>
    %cst_17 = arith.constant 0.000000e+00 : f32
    %43 = vector.broadcast %cst_17 : f32 to vector<8x32xf32>
    %44 = arith.maximumf %42, %43 : vector<8x32xf32>
    %c0_18 = arith.constant 0 : index
    %c0_19 = arith.constant 0 : index
    %45 = vector.load %arg10[%c0_18, %c0_19] : memref<8x32xf32, #tpu.memory_space<vmem>>, vector<8x32xf32>
    tpu.vector_store %arg10[%c0_18, %c0_19], %44 {strides = array<i32>} : memref<8x32xf32, #tpu.memory_space<vmem>>, vector<8x32xf32>,
    %c0_20 = arith.constant 0 : index
    %c0_21 = arith.constant 0 : index
    %46 = vector.load %arg8[%c0_20, %c0_21] : memref<1x32xf32, #tpu.memory_space<vmem>>, vector<1x32xf32>
    %47 = vector.broadcast %46 : vector<1x32xf32> to vector<8x32xf32>
    %48 = arith.mulf %44, %47 : vector<8x32xf32>
    %cst_22 = arith.constant dense<0.000000e+00> : vector<8xf32>
    %49 = vector.multi_reduction <add>, %48, %cst_22 [1] : vector<8x32xf32> to vector<8xf32>
    %50 = vector.shape_cast %49 : vector<8xf32> to vector<8x1xf32>
    %c0_23 = arith.constant 0 : index
    %c0_24 = arith.constant 0 : index
    %51 = vector.load %arg9[%c0_23, %c0_24] : memref<1x1xf32, #tpu.memory_space<vmem>>, vector<1x1xf32>
    %52 = vector.broadcast %51 : vector<1x1xf32> to vector<8x1xf32>
    %53 = arith.addf %50, %52 : vector<8x1xf32>
    %c0_25 = arith.constant 0 : index
    %c0_26 = arith.constant 0 : index
    %54 = vector.load %arg11[%c0_25, %c0_26] : memref<8x1xf32, #tpu.memory_space<vmem>>, vector<8x1xf32>
    tpu.vector_store %arg11[%c0_25, %c0_26], %53 {strides = array<i32>} : memref<8x1xf32, #tpu.memory_space<vmem>>, vector<8x1xf32>,
    return
  }
  func.func @transform_0(%arg0: i32) -> (i32, i32) {
    %c0_i32 = arith.constant 0 : i32
    %c0_i32_0 = arith.constant 0 : i32
    return %arg0, %c0_i32 : i32, i32
  }
  func.func @transform_1(%arg0: i32) -> (i32, i32) {
    %c0_i32 = arith.constant 0 : i32
    %c0_i32_0 = arith.constant 0 : i32
    return %arg0, %c0_i32 : i32, i32
  }
  func.func @transform_2(%arg0: i32) -> (i32, i32) {
    %c0_i32 = arith.constant 0 : i32
    %c0_i32_0 = arith.constant 0 : i32
    %c0_i32_1 = arith.constant 0 : i32
    return %c0_i32, %c0_i32_0 : i32, i32
  }
  func.func @transform_3(%arg0: i32) -> (i32, i32) {
    %c0_i32 = arith.constant 0 : i32
    %c0_i32_0 = arith.constant 0 : i32
    %c0_i32_1 = arith.constant 0 : i32
    return %c0_i32, %c0_i32_0 : i32, i32
  }
  func.func @transform_4(%arg0: i32) -> (i32, i32) {
    %c0_i32 = arith.constant 0 : i32
    %c0_i32_0 = arith.constant 0 : i32
    %c0_i32_1 = arith.constant 0 : i32
    return %c0_i32, %c0_i32_0 : i32, i32
  }
  func.func @transform_5(%arg0: i32) -> (i32, i32) {
    %c0_i32 = arith.constant 0 : i32
    %c0_i32_0 = arith.constant 0 : i32
    %c0_i32_1 = arith.constant 0 : i32
    return %c0_i32, %c0_i32_0 : i32, i32
  }
  func.func @transform_6(%arg0: i32) -> (i32, i32) {
    %c0_i32 = arith.constant 0 : i32
    %c0_i32_0 = arith.constant 0 : i32
    %c0_i32_1 = arith.constant 0 : i32
    return %c0_i32, %c0_i32_0 : i32, i32
  }
  func.func @transform_7(%arg0: i32) -> (i32, i32) {
    %c0_i32 = arith.constant 0 : i32
    %c0_i32_0 = arith.constant 0 : i32
    %c0_i32_1 = arith.constant 0 : i32
    return %c0_i32, %c0_i32_0 : i32, i32
  }
  func.func @transform_8(%arg0: i32) -> (i32, i32) {
    %c0_i32 = arith.constant 0 : i32
    %c0_i32_0 = arith.constant 0 : i32
    %c0_i32_1 = arith.constant 0 : i32
    return %c0_i32, %c0_i32_0 : i32, i32
  }
  func.func @transform_9(%arg0: i32) -> (i32, i32) {
    %c0_i32 = arith.constant 0 : i32
    %c0_i32_0 = arith.constant 0 : i32
    return %arg0, %c0_i32 : i32, i32
  }
  func.func @transform_10(%arg0: i32) -> (i32, i32) {
    %c0_i32 = arith.constant 0 : i32
    %c0_i32_0 = arith.constant 0 : i32
    return %arg0, %c0_i32 : i32, i32
  }
}

</mosaic_0001>

<llo_original>
// kernel: tpu_custom_call.1
$region0: #{tpu_custom_call.1}
  #allocation0 [shape = 'u32[]', space=smem, size = 0x4, offset = 0x4, fixed_abs, tag = 'smem constant byte address 0x4 - core index']
  #allocation1 [shape = 'u32[72,128]{1,0:T(1,128)}', space=vmem, size = 0x9000, scoped, tag = 'internal scratch']
  #allocation2 [shape = 'f32[1,1]{1,0:T(1,128)S(1)}', space=vmem, size = 0x200, scoped, tag = 'scoped memory for tpu_custom_call.1']
  %s0 = inlined_call_operand.vmem [shape: s32[16,3], index: 0, kind: input, shape index: {}]
  %s1 = inlined_call_operand.vmem [shape: f32[16,16], index: 1, kind: input, shape index: {}]
  %s2 = inlined_call_operand.vmem [shape: f32[32,64], index: 2, kind: input, shape index: {}]
  %s3 = inlined_call_operand.vmem [shape: f32[16,64], index: 3, kind: input, shape index: {}]
  %s4 = inlined_call_operand.vmem [shape: f32[1,64], index: 4, kind: input, shape index: {}]
  %s5 = inlined_call_operand.vmem [shape: f32[64,32], index: 5, kind: input, shape index: {}]
  %s6 = inlined_call_operand.vmem [shape: f32[1,32], index: 6, kind: input, shape index: {}]
  %s7 = inlined_call_operand.vmem [shape: f32[1,32], index: 7, kind: input, shape index: {}]
  %s8 = inlined_call_operand.<no memory space> [shape: f32[1,1], index: 8, kind: input, shape index: {}]
  %s9 = inlined_call_operand.hbm [shape: f32[16,32], index: 9, kind: output, shape index: {0}]
  %s10 = inlined_call_operand.vmem [shape: f32[16,1], index: 10, kind: output, shape index: {1}]
  %11 = xla_tuple %s9, %s10
  %s12 = sld [smem:[#allocation0]]
  $region77: #{tpu_custom_call.1} parent=0
    _
  %s14 = ssub.s32 1, %s12
  %s15 = scalar_select 0, %s14, %s12
  %v16 = vstv %s8
  %17 = vst [vmem:[#allocation2] sm:$0x1] %v16
  $region1: #{tpu_custom_call.1} parent=0
    #allocation3 [shape = 'u8[8192]{0}', space=vmem, size = 0x2000, scoped, tag = 'output window, operand 0']
    #allocation4 [shape = 's32[2]{0}', space=sflag, size = 0x8, scoped, tag = 'scoped memory for tpu_custom_call.1']
    %18 = vsyncpa [#allocation4], 0
    %s19 = scalar_lea.sflag [#allocation4], 1
    %20 = vsyncpa %s19, 0
    loop: start=0, step=1, limit=4
    $region2: #{tpu_custom_call.1} parent=1 // loop_pre_header
      _
    $region3: #{tpu_custom_call.1} parent=1 // loop_header
      %s22 = sphi 0, %s26
      %p23 = scmp.ge.s32.totalorder %s22, 4
      %s32 = sphi 0, %s34
      %s35 = sphi 0, %s32
      %s36 = sphi 0, %s35
      %s52 = sphi 0, %s36
      %s58 = sphi 0, %s60
      %s61 = sphi 0, %s58
      %s62 = sphi 0, %s61
      %s78 = sphi 0, %s62
      %s82 = sphi 0, %s82
      %s84 = sphi 0, %s82
      %s85 = sphi 0, %s84
      %s99 = sphi 0, %s85
      %s103 = sphi 0, %s103
      %s105 = sphi 0, %s103
      %s106 = sphi 0, %s105
      %s120 = sphi 0, %s106
      %s124 = sphi 0, %s124
      %s126 = sphi 0, %s124
      %s127 = sphi 0, %s126
      %s141 = sphi 0, %s127
      %s145 = sphi 0, %s145
      %s147 = sphi 0, %s145
      %s148 = sphi 0, %s147
      %s162 = sphi 0, %s148
      %s166 = sphi 0, %s166
      %s168 = sphi 0, %s166
      %s169 = sphi 0, %s168
      %s183 = sphi 0, %s169
      %s187 = sphi 0, %s187
      %s189 = sphi 0, %s187
      %s190 = sphi 0, %s189
      %s204 = sphi 0, %s190
      %s208 = sphi 0, %s208
      %s210 = sphi 0, %s208
      %s211 = sphi 0, %s210
      %s225 = sphi 0, %s211
      %s231 = sphi 0, %s233
      %s234 = sphi 0, %s231
      %s235 = sphi 0, %s234
      %s251 = sphi 0, %s235
      %s257 = sphi 0, %s259
      %s260 = sphi 0, %s257
      %s261 = sphi 0, %s260
      %s277 = sphi 0, %s261
    $region4: #{tpu_custom_call.1} parent=1 // loop_header_branch
      %25 = sbr.rel (%p23) target = $region8
    $region5: #{tpu_custom_call.1} parent=1 // loop_body
      %s27 = ssub.s32 %s22, 1
      %s28 = ssub.s32 %s22, 2
      %s29 = sadd.s32 %s22, 1
      %s30 = ssub.s32 %s22, %s29
      %p31 = scmp.eq.s32.totalorder %s30, 0
      %s33 = sadd.s32 %s32, 1
      %s34 = scalar_select %p31, %s32, %s33
      %p37 = pneg %p31
      %p38 = scmp.eq.s32.totalorder %s22, 1
      %p39 = por %p37, %p38
      %p40 = scmp.ne.s32.totalorder %s32, %s35
      %p41 = scmp.eq.s32.totalorder %s22, 0
      %p42 = por %p40, %p41
      %p43 = scmp.ne.s32.totalorder %s32, %s35
      %p44 = scmp.eq.s32.totalorder %s27, 1
      %p45 = por %p43, %p44
      %p46 = scmp.ne.s32.totalorder %s35, %s36
      %p47 = scmp.eq.s32.totalorder %s27, 0
      %p48 = por %p46, %p47
      %p49 = scmp.ne.s32.totalorder %s35, %s36
      %p50 = scmp.eq.s32.totalorder %s28, 1
      %p51 = por %p49, %p50
      %p53 = scmp.ne.s32.totalorder %s36, %s52
      %p54 = scmp.eq.s32.totalorder %s28, 0
      %p55 = por %p53, %p54
      %s56 = ssub.s32 %s22, %s29
      %p57 = scmp.eq.s32.totalorder %s56, 0
      %s59 = sadd.s32 %s58, 1
      %s60 = scalar_select %p57, %s58, %s59
      %p63 = pneg %p57
      %p64 = scmp.eq.s32.totalorder %s22, 1
      %p65 = por %p63, %p64
      %p66 = scmp.ne.s32.totalorder %s58, %s61
      %p67 = scmp.eq.s32.totalorder %s22, 0
      %p68 = por %p66, %p67
      %p69 = scmp.ne.s32.totalorder %s58, %s61
      %p70 = scmp.eq.s32.totalorder %s27, 1
      %p71 = por %p69, %p70
      %p72 = scmp.ne.s32.totalorder %s61, %s62
      %p73 = scmp.eq.s32.totalorder %s27, 0
      %p74 = por %p72, %p73
      %p75 = scmp.ne.s32.totalorder %s61, %s62
      %p76 = scmp.eq.s32.totalorder %s28, 1
      %p77 = por %p75, %p76
      %p79 = scmp.ne.s32.totalorder %s62, %s78
      %p80 = scmp.eq.s32.totalorder %s28, 0
      %p81 = por %p79, %p80
      %s83 = sadd.s32 %s82, 1
      %p86 = scmp.eq.s32.totalorder %s22, 1
      %p87 = scmp.ne.s32.totalorder %s82, %s84
      %p88 = scmp.eq.s32.totalorder %s22, 0
      %p89 = por %p87, %p88
      %p90 = scmp.ne.s32.totalorder %s82, %s84
      %p91 = scmp.eq.s32.totalorder %s27, 1
      %p92 = por %p90, %p91
      %p93 = scmp.ne.s32.totalorder %s84, %s85
      %p94 = scmp.eq.s32.totalorder %s27, 0
      %p95 = por %p93, %p94
      %p96 = scmp.ne.s32.totalorder %s84, %s85
      %p97 = scmp.eq.s32.totalorder %s28, 1
      %p98 = por %p96, %p97
      %p100 = scmp.ne.s32.totalorder %s85, %s99
      %p101 = scmp.eq.s32.totalorder %s28, 0
      %p102 = por %p100, %p101
      %s104 = sadd.s32 %s103, 1
      %p107 = scmp.eq.s32.totalorder %s22, 1
      %p108 = scmp.ne.s32.totalorder %s103, %s105
      %p109 = scmp.eq.s32.totalorder %s22, 0
      %p110 = por %p108, %p109
      %p111 = scmp.ne.s32.totalorder %s103, %s105
      %p112 = scmp.eq.s32.totalorder %s27, 1
      %p113 = por %p111, %p112
      %p114 = scmp.ne.s32.totalorder %s105, %s106
      %p115 = scmp.eq.s32.totalorder %s27, 0
      %p116 = por %p114, %p115
      %p117 = scmp.ne.s32.totalorder %s105, %s106
      %p118 = scmp.eq.s32.totalorder %s28, 1
      %p119 = por %p117, %p118
      %p121 = scmp.ne.s32.totalorder %s106, %s120
      %p122 = scmp.eq.s32.totalorder %s28, 0
      %p123 = por %p121, %p122
      %s125 = sadd.s32 %s124, 1
      %p128 = scmp.eq.s32.totalorder %s22, 1
      %p129 = scmp.ne.s32.totalorder %s124, %s126
      %p130 = scmp.eq.s32.totalorder %s22, 0
      %p131 = por %p129, %p130
      %p132 = scmp.ne.s32.totalorder %s124, %s126
      %p133 = scmp.eq.s32.totalorder %s27, 1
      %p134 = por %p132, %p133
      %p135 = scmp.ne.s32.totalorder %s126, %s127
      %p136 = scmp.eq.s32.totalorder %s27, 0
      %p137 = por %p135, %p136
      %p138 = scmp.ne.s32.totalorder %s126, %s127
      %p139 = scmp.eq.s32.totalorder %s28, 1
      %p140 = por %p138, %p139
      %p142 = scmp.ne.s32.totalorder %s127, %s141
      %p143 = scmp.eq.s32.totalorder %s28, 0
      %p144 = por %p142, %p143
      %s146 = sadd.s32 %s145, 1
      %p149 = scmp.eq.s32.totalorder %s22, 1
      %p150 = scmp.ne.s32.totalorder %s145, %s147
      %p151 = scmp.eq.s32.totalorder %s22, 0
      %p152 = por %p150, %p151
      %p153 = scmp.ne.s32.totalorder %s145, %s147
      %p154 = scmp.eq.s32.totalorder %s27, 1
      %p155 = por %p153, %p154
      %p156 = scmp.ne.s32.totalorder %s147, %s148
      %p157 = scmp.eq.s32.totalorder %s27, 0
      %p158 = por %p156, %p157
      %p159 = scmp.ne.s32.totalorder %s147, %s148
      %p160 = scmp.eq.s32.totalorder %s28, 1
      %p161 = por %p159, %p160
      %p163 = scmp.ne.s32.totalorder %s148, %s162
      %p164 = scmp.eq.s32.totalorder %s28, 0
      %p165 = por %p163, %p164
      %s167 = sadd.s32 %s166, 1
      %p170 = scmp.eq.s32.totalorder %s22, 1
      %p171 = scmp.ne.s32.totalorder %s166, %s168
      %p172 = scmp.eq.s32.totalorder %s22, 0
      %p173 = por %p171, %p172
      %p174 = scmp.ne.s32.totalorder %s166, %s168
      %p175 = scmp.eq.s32.totalorder %s27, 1
      %p176 = por %p174, %p175
      %p177 = scmp.ne.s32.totalorder %s168, %s169
      %p178 = scmp.eq.s32.totalorder %s27, 0
      %p179 = por %p177, %p178
      %p180 = scmp.ne.s32.totalorder %s168, %s169
      %p181 = scmp.eq.s32.totalorder %s28, 1
      %p182 = por %p180, %p181
      %p184 = scmp.ne.s32.totalorder %s169, %s183
      %p185 = scmp.eq.s32.totalorder %s28, 0
      %p186 = por %p184, %p185
      %s188 = sadd.s32 %s187, 1
      %p191 = scmp.eq.s32.totalorder %s22, 1
      %p192 = scmp.ne.s32.totalorder %s187, %s189
      %p193 = scmp.eq.s32.totalorder %s22, 0
      %p194 = por %p192, %p193
      %p195 = scmp.ne.s32.totalorder %s187, %s189
      %p196 = scmp.eq.s32.totalorder %s27, 1
      %p197 = por %p195, %p196
      %p198 = scmp.ne.s32.totalorder %s189, %s190
      %p199 = scmp.eq.s32.totalorder %s27, 0
      %p200 = por %p198, %p199
      %p201 = scmp.ne.s32.totalorder %s189, %s190
      %p202 = scmp.eq.s32.totalorder %s28, 1
      %p203 = por %p201, %p202
      %p205 = scmp.ne.s32.totalorder %s190, %s204
      %p206 = scmp.eq.s32.totalorder %s28, 0
      %p207 = por %p205, %p206
      %s209 = sadd.s32 %s208, 1
      %p212 = scmp.eq.s32.totalorder %s22, 1
      %p213 = scmp.ne.s32.totalorder %s208, %s210
      %p214 = scmp.eq.s32.totalorder %s22, 0
      %p215 = por %p213, %p214
      %p216 = scmp.ne.s32.totalorder %s208, %s210
      %p217 = scmp.eq.s32.totalorder %s27, 1
      %p218 = por %p216, %p217
      %p219 = scmp.ne.s32.totalorder %s210, %s211
      %p220 = scmp.eq.s32.totalorder %s27, 0
      %p221 = por %p219, %p220
      %p222 = scmp.ne.s32.totalorder %s210, %s211
      %p223 = scmp.eq.s32.totalorder %s28, 1
      %p224 = por %p222, %p223
      %p226 = scmp.ne.s32.totalorder %s211, %s225
      %p227 = scmp.eq.s32.totalorder %s28, 0
      %p228 = por %p226, %p227
      %s229 = ssub.s32 %s22, %s29
      %p230 = scmp.eq.s32.totalorder %s229, 0
      %s232 = sadd.s32 %s231, 1
      %s233 = scalar_select %p230, %s231, %s232
      %p236 = pneg %p230
      %p237 = scmp.eq.s32.totalorder %s22, 1
      %p238 = por %p236, %p237
      %p239 = scmp.ne.s32.totalorder %s231, %s234
      %p240 = scmp.eq.s32.totalorder %s22, 0
      %p241 = por %p239, %p240
      %p242 = scmp.ne.s32.totalorder %s231, %s234
      %p243 = scmp.eq.s32.totalorder %s27, 1
      %p244 = por %p242, %p243
      %p245 = scmp.ne.s32.totalorder %s234, %s235
      %p246 = scmp.eq.s32.totalorder %s27, 0
      %p247 = por %p245, %p246
      %p248 = scmp.ne.s32.totalorder %s234, %s235
      %p249 = scmp.eq.s32.totalorder %s28, 1
      %p250 = por %p248, %p249
      %p252 = scmp.ne.s32.totalorder %s235, %s251
      %p253 = scmp.eq.s32.totalorder %s28, 0
      %p254 = por %p252, %p253
      %s255 = ssub.s32 %s22, %s29
      %p256 = scmp.eq.s32.totalorder %s255, 0
      %s258 = sadd.s32 %s257, 1
      %s259 = scalar_select %p256, %s257, %s258
      %p262 = pneg %p256
      %p263 = scmp.eq.s32.totalorder %s22, 1
      %p264 = por %p262, %p263
      %p265 = scmp.ne.s32.totalorder %s257, %s260
      %p266 = scmp.eq.s32.totalorder %s22, 0
      %p267 = por %p265, %p266
      %p268 = scmp.ne.s32.totalorder %s257, %s260
      %p269 = scmp.eq.s32.totalorder %s27, 1
      %p270 = por %p268, %p269
      %p271 = scmp.ne.s32.totalorder %s260, %s261
      %p272 = scmp.eq.s32.totalorder %s27, 0
      %p273 = por %p271, %p272
      %p274 = scmp.ne.s32.totalorder %s260, %s261
      %p275 = scmp.eq.s32.totalorder %s28, 1
      %p276 = por %p274, %p275
      %p278 = scmp.ne.s32.totalorder %s261, %s277
      %p279 = scmp.eq.s32.totalorder %s28, 0
      %p280 = por %p278, %p279
      %p281 = scmp.le.s32.totalorder 1, %s22
      %p282 = scmp.lt.s32.totalorder %s22, 3
      %p283 = pnand %p281, %p282
      %p284 = pneg %p283
      // Predicated region
      $region9: #{tpu_custom_call.1} parent=5 // pred_check
        _
      $region10: #{tpu_custom_call.1} parent=5 // pred_check_branch
        %286 = sbr.rel (%p283) target = $region12
      $region11: #{tpu_custom_call.1} parent=5 // pred_region
        %s287 = ssub.s32 %s22, 1
        // Predicated region
        $region13: #{tpu_custom_call.1} parent=11 // pred_check
          %p288 = pneg %p95
        $region14: #{tpu_custom_call.1} parent=11 // pred_check_branch
          %290 = sbr.rel (%p288) target = $region16
        $region15: #{tpu_custom_call.1} parent=11 // pred_region
          _
        $region16: #{tpu_custom_call.1} parent=11 // pred_fallthru
          _
        // Predicated region
        $region17: #{tpu_custom_call.1} parent=11 // pred_check
          %p291 = pneg %p116
        $region18: #{tpu_custom_call.1} parent=11 // pred_check_branch
          %293 = sbr.rel (%p291) target = $region20
        $region19: #{tpu_custom_call.1} parent=11 // pred_region
          _
        $region20: #{tpu_custom_call.1} parent=11 // pred_fallthru
          _
        // Predicated region
        $region21: #{tpu_custom_call.1} parent=11 // pred_check
          %p294 = pneg %p137
        $region22: #{tpu_custom_call.1} parent=11 // pred_check_branch
          %296 = sbr.rel (%p294) target = $region24
        $region23: #{tpu_custom_call.1} parent=11 // pred_region
          _
        $region24: #{tpu_custom_call.1} parent=11 // pred_fallthru
          _
        // Predicated region
        $region25: #{tpu_custom_call.1} parent=11 // pred_check
          %p297 = pneg %p158
        $region26: #{tpu_custom_call.1} parent=11 // pred_check_branch
          %299 = sbr.rel (%p297) target = $region28
        $region27: #{tpu_custom_call.1} parent=11 // pred_region
          _
        $region28: #{tpu_custom_call.1} parent=11 // pred_fallthru
          _
        // Predicated region
        $region29: #{tpu_custom_call.1} parent=11 // pred_check
          %p300 = pneg %p179
        $region30: #{tpu_custom_call.1} parent=11 // pred_check_branch
          %302 = sbr.rel (%p300) target = $region32
        $region31: #{tpu_custom_call.1} parent=11 // pred_region
          _
        $region32: #{tpu_custom_call.1} parent=11 // pred_fallthru
          _
        // Predicated region
        $region33: #{tpu_custom_call.1} parent=11 // pred_check
          %p303 = pneg %p200
        $region34: #{tpu_custom_call.1} parent=11 // pred_check_branch
          %305 = sbr.rel (%p303) target = $region36
        $region35: #{tpu_custom_call.1} parent=11 // pred_region
          _
        $region36: #{tpu_custom_call.1} parent=11 // pred_fallthru
          _
        // Predicated region
        $region37: #{tpu_custom_call.1} parent=11 // pred_check
          %p306 = pneg %p221
        $region38: #{tpu_custom_call.1} parent=11 // pred_check_branch
          %308 = sbr.rel (%p306) target = $region40
        $region39: #{tpu_custom_call.1} parent=11 // pred_region
          _
        $region40: #{tpu_custom_call.1} parent=11 // pred_fallthru
          _
      $region12: #{tpu_custom_call.1} parent=5 // pred_fallthru
        _
      %p309 = scmp.lt.s32.totalorder %s22, 2
      // Predicated region
      $region41: #{tpu_custom_call.1} parent=5 // pred_check
        %p310 = pneg %p309
      $region42: #{tpu_custom_call.1} parent=5 // pred_check_branch
        %312 = sbr.rel (%p310) target = $region44
      $region43: #{tpu_custom_call.1} parent=5 // pred_region
        // Predicated region
        $region45: #{tpu_custom_call.1} parent=43 // pred_check
          %p313 = pneg %p42
        $region46: #{tpu_custom_call.1} parent=43 // pred_check_branch
          %315 = sbr.rel (%p313) target = $region48
        $region47: #{tpu_custom_call.1} parent=43 // pred_region
          %p316 = scmp.lt.s32.totalorder %s22, 1
          %s317 = scalar_select %p316, %s22, 1
          %s318 = smul.addr %s317, 8
          %s319 = scalar_lea.vmem %s0, %s318
        $region48: #{tpu_custom_call.1} parent=43 // pred_fallthru
          _
        // Predicated region
        $region49: #{tpu_custom_call.1} parent=43 // pred_check
          %p320 = pneg %p68
        $region50: #{tpu_custom_call.1} parent=43 // pred_check_branch
          %322 = sbr.rel (%p320) target = $region52
        $region51: #{tpu_custom_call.1} parent=43 // pred_region
          %p323 = scmp.lt.s32.totalorder %s22, 1
          %s324 = scalar_select %p323, %s22, 1
          %s325 = smul.addr %s324, 8
          %s326 = scalar_lea.vmem %s1, %s325
        $region52: #{tpu_custom_call.1} parent=43 // pred_fallthru
          _
      $region44: #{tpu_custom_call.1} parent=5 // pred_fallthru
        _
      %p327 = scmp.le.s32.totalorder 1, %s22
      %p328 = scmp.lt.s32.totalorder %s22, 3
      %p329 = pnand %p327, %p328
      %p330 = pneg %p329
      // Predicated region
      $region53: #{tpu_custom_call.1} parent=5 // pred_check
        _
      $region54: #{tpu_custom_call.1} parent=5 // pred_check_branch
        %332 = sbr.rel (%p329) target = $region56
      $region55: #{tpu_custom_call.1} parent=5 // pred_region
        %s333 = ssub.s32 %s22, 1
        %p334 = scmp.lt.s32.totalorder %s27, 1
        %s335 = scalar_select %p334, %s27, 1
        %s336 = smul.addr %s335, 8
        %s337 = scalar_lea.vmem %s0, %s336
        %p338 = pneg %p48
        %p339 = pneg %p45
        %p340 = scmp.lt.s32.totalorder %s27, 1
        %s341 = scalar_select %p340, %s27, 1
        %s342 = smul.addr %s341, 8
        %s343 = scalar_lea.vmem %s1, %s342
        %p344 = pneg %p74
        %p345 = pneg %p71
        %p346 = pneg %p95
        %p347 = pneg %p92
        %p348 = pneg %p116
        %p349 = pneg %p113
        %p350 = pneg %p137
        %p351 = pneg %p134
        %p352 = pneg %p158
        %p353 = pneg %p155
        %p354 = pneg %p179
        %p355 = pneg %p176
        %p356 = pneg %p200
        %p357 = pneg %p197
        %p358 = pneg %p221
        %p359 = pneg %p218
        %p360 = pneg %p247
        %p361 = pneg %p244
        %s362 = sand.u32 %s234, 1
        %s363 = scalar_lea.sflag [#allocation4], %s362
        %s364 = sand.u32 %s234, 1
        %s365 = smul.addr %s364, 8
        %s366 = scalar_lea.vmem [#allocation3], %s365
        %p367 = pneg %p273
        %p368 = pneg %p270
        %p369 = scmp.lt.s32.totalorder %s27, 1
        %s370 = scalar_select %p369, %s27, 1
        %s371 = smul.addr %s370, 8
        %s372 = scalar_lea.vmem %s10, %s371
        %p373 = scmp.lt.s32.totalorder %s27, 1
        %s374 = scalar_select %p373, %s27, 1
        %s375 = smul.addr %s374, 8
        %s376 = scalar_lea.vmem %s0, %s375
        %p377 = scmp.lt.s32.totalorder %s27, 1
        %s378 = scalar_select %p377, %s27, 1
        %s379 = smul.addr %s378, 8
        %s380 = scalar_lea.vmem %s1, %s379
        %p381 = scmp.lt.s32.totalorder %s27, 1
        %s382 = scalar_select %p381, %s27, 1
        %s383 = smul.addr %s382, 8
        %s384 = scalar_lea.vmem %s10, %s383
        %v385 = vld [vmem:[%s376] sm:$0xff]
        %v386 = vlaneseq
        %v387 = vand.u32 %v386, 127
        %388 = vset.pattern.permute.xlu0 0
        %389 = vperm.xlu0 %388, %v385
        %v390 = vpop.permute.xlu0 %389
        %vm391 = vcmp.eq.s32.totalorder %v387, %v390
        %v392 = vsel %vm391, 1, 0
        %v393 = vcvt.s32.f32 %v392
        %v394 = vadd.f32 %v393, 0.0
        %v395 = vadd.s32 %v385, 16
        %396 = vset.pattern.permute.xlu0 1
        %397 = vperm.xlu0 %396, %v395
        %v398 = vpop.permute.xlu0 %397
        %vm399 = vcmp.eq.s32.totalorder %v387, %v398
        %v400 = vsel %vm399, 1, 0
        %v401 = vcvt.s32.f32 %v400
        %v402 = vadd.f32 %v394, %v401
        %v403 = vadd.s32 %v385, 24
        %404 = vset.pattern.permute.xlu0 2
        %405 = vperm.xlu0 %404, %v403
        %v406 = vpop.permute.xlu0 %405
        %vm407 = vcmp.eq.s32.totalorder %v387, %v406
        %v408 = vsel %vm407, 1, 0
        %v409 = vcvt.s32.f32 %v408
        %v410 = vadd.f32 %v402, %v409
        %v411 = vld [vmem:[%s2] sm:$0xff]
        %v412 = vld [vmem:[%s2 + $0x8] sm:$0xff]
        %v413 = vld [vmem:[%s2 + $0x10] sm:$0xff]
        %v414 = vld [vmem:[%s2 + $0x18] sm:$0xff]
        %v415 = vld [vmem:[%s380] sm:$0xff]
        %v416 = vld [vmem:[%s3] sm:$0xff]
        %v417 = vld [vmem:[%s3 + $0x8] sm:$0xff]
        %vm418 = vcmask 130048
        %v420 = vsel %vm418, %v415, 0
        %422 = vmatpush.msra.mxu0 0.0
        %423 = vmatpush.msra.mxu0 0.0
        %424 = vmatpush.msra.mxu0 0.0
        %425 = vmatpush.msra.mxu0 0.0
        %426 = vmatpush.msra.mxu0 0.0
        %427 = vmatpush.msra.mxu0 0.0
        %428 = vmatpush.msra.mxu0 0.0
        %429 = vmatpush.msra.mxu0 0.0
        %430 = vmatpush.msra.mxu0 0.0
        %431 = vmatpush.msra.mxu0 0.0
        %432 = vmatpush.msra.mxu0 0.0
        %433 = vmatpush.msra.mxu0 0.0
        %434 = vmatpush.msra.mxu0 0.0
        %435 = vmatpush.msra.mxu0 0.0
        %436 = vmatpush.msra.mxu0 %v417
        %437 = vmatpush.msra.mxu0 %v416
        %438 = vmatmul.f32.gmra.mxu0 %v420
        %v439 = vpop.f32.mrf.mxu0
        %v440 = vadd.f32 0.0, %v439
        %441 = vdwg.mxu0
        %vm442 = vcmask 261120
        %v444 = vsel %vm442, %v410, 0
        %446 = vmatpush.msra.mxu0 0.0
        %447 = vmatpush.msra.mxu0 0.0
        %448 = vmatpush.msra.mxu0 0.0
        %449 = vmatpush.msra.mxu0 0.0
        %450 = vmatpush.msra.mxu0 0.0
        %451 = vmatpush.msra.mxu0 0.0
        %452 = vmatpush.msra.mxu0 0.0
        %453 = vmatpush.msra.mxu0 0.0
        %454 = vmatpush.msra.mxu0 0.0
        %455 = vmatpush.msra.mxu0 0.0
        %456 = vmatpush.msra.mxu0 0.0
        %457 = vmatpush.msra.mxu0 0.0
        %458 = vmatpush.msra.mxu0 %v414
        %459 = vmatpush.msra.mxu0 %v413
        %460 = vmatpush.msra.mxu0 %v412
        %461 = vmatpush.msra.mxu0 %v411
        %462 = vmatmul.f32.gmra.mxu0 %v444
        %v463 = vpop.f32.mrf.mxu0
        %v464 = vadd.f32 %v440, %v463
        %465 = vdwg.mxu0
        %v466 = vld [vmem:[%s4] sm:$0x1]
        %v468 = vperm.slane %v466, 0
        %v470 = vadd.f32 %v464, %v468
        %v471 = vmax.f32 %v470, 0.0
        %v472 = vld [vmem:[%s5] sm:$0xff]
        %v473 = vld [vmem:[%s5 + $0x8] sm:$0xff]
        %v474 = vld [vmem:[%s5 + $0x10] sm:$0xff]
        %v475 = vld [vmem:[%s5 + $0x18] sm:$0xff]
        %v476 = vld [vmem:[%s5 + $0x20] sm:$0xff]
        %v477 = vld [vmem:[%s5 + $0x28] sm:$0xff]
        %v478 = vld [vmem:[%s5 + $0x30] sm:$0xff]
        %v479 = vld [vmem:[%s5 + $0x38] sm:$0xff]
        %v480 = vld [vmem:[%s6] sm:$0x1]
        %v482 = vperm.slane %v480, 0
        %vm484 = vcmask 523264
        %v486 = vsel %vm484, %v471, 0
        %488 = vmatpush.msra.mxu0 0.0
        %489 = vmatpush.msra.mxu0 0.0
        %490 = vmatpush.msra.mxu0 0.0
        %491 = vmatpush.msra.mxu0 0.0
        %492 = vmatpush.msra.mxu0 0.0
        %493 = vmatpush.msra.mxu0 0.0
        %494 = vmatpush.msra.mxu0 0.0
        %495 = vmatpush.msra.mxu0 0.0
        %496 = vmatpush.msra.mxu0 %v479
        %497 = vmatpush.msra.mxu0 %v478
        %498 = vmatpush.msra.mxu0 %v477
        %499 = vmatpush.msra.mxu0 %v476
        %500 = vmatpush.msra.mxu0 %v475
        %501 = vmatpush.msra.mxu0 %v474
        %502 = vmatpush.msra.mxu0 %v473
        %503 = vmatpush.msra.mxu0 %v472
        %504 = vmatmul.f32.gmra.mxu0 %v486
        %v505 = vpop.f32.mrf.mxu0
        %v506 = vadd.f32 %v482, %v505
        %507 = vdwg.mxu0
        %v508 = vmax.f32 %v506, 0.0
        %509 = vst.msk [vmem:[%s366] sm:$0xff] %vm442, %v508
        %v510 = vld [vmem:[%s7] sm:$0x1]
        %v512 = vperm.slane %v510, 0
        %v514 = vmul.f32 %v508, %v512
        %v515 = vsel %vm442, %v514, 0.0
        %516 = vadd.xlane.f32.xlu0 %v515
        %v517 = vpop.xlane.xlu0 %516
        %v518 = vld [vmem:[#allocation2] sm:$0x1]
        %v520 = vperm.slane %v518, 0
        %v522 = vadd.f32 %v517, %v520
        %vm523 = vcmask 7168
        %524 = vst.msk [vmem:[%s384] sm:$0xff] %vm523, %v522
        %s525 = sand.u32 %s234, 1
        %s526 = scalar_lea.sflag [#allocation4], %s525
        %s527 = sand.u32 %s234, 1
        %s528 = smul.addr %s527, 8
        %s529 = scalar_lea.vmem [#allocation3], %s528
        %p530 = scmp.lt.s32.totalorder %s27, 1
        %s531 = scalar_select %p530, %s27, 1
        %s532 = smul.addr %s531, 8
        %s533 = scalar_lea.vmem %s10, %s532
        // Predicated region
        $region57: #{tpu_custom_call.1} parent=55 // pred_check
          %p534 = pneg %p244
        $region58: #{tpu_custom_call.1} parent=55 // pred_check_branch
          %536 = sbr.rel (%p534) target = $region60
        $region59: #{tpu_custom_call.1} parent=55 // pred_region
          %538 = vsyncadd %s526, 0
          %s539 = smul.addr %s27, 8
          %s540 = scalar_lea.hbm %s9, %s539
          %s542 = sshll.u32 %s529, 4
          %s543 = int_to_ptr.vmem [resolvable:$true] %s542
          %s544 = sshll.u32 %s540, 4
          %s545 = int_to_ptr.hbm [resolvable:$true] %s544
          %547 = dma.vmem_to_hbm [thread:$0]  %s543, 128, %s545, %s526
        $region60: #{tpu_custom_call.1} parent=55 // pred_fallthru
          _
        // Predicated region
        $region61: #{tpu_custom_call.1} parent=55 // pred_check
          %p548 = pneg %p270
        $region62: #{tpu_custom_call.1} parent=55 // pred_check_branch
          %550 = sbr.rel (%p548) target = $region64
        $region63: #{tpu_custom_call.1} parent=55 // pred_region
          _
        $region64: #{tpu_custom_call.1} parent=55 // pred_fallthru
          _
      $region56: #{tpu_custom_call.1} parent=5 // pred_fallthru
        _
      %p551 = scmp.le.s32.totalorder 2, %s22
      // Predicated region
      $region65: #{tpu_custom_call.1} parent=5 // pred_check
        %p552 = pneg %p551
      $region66: #{tpu_custom_call.1} parent=5 // pred_check_branch
        %554 = sbr.rel (%p552) target = $region68
      $region67: #{tpu_custom_call.1} parent=5 // pred_region
        %s555 = ssub.s32 %s22, 2
        // Predicated region
        $region69: #{tpu_custom_call.1} parent=67 // pred_check
          %p556 = pneg %p250
        $region70: #{tpu_custom_call.1} parent=67 // pred_check_branch
          %558 = sbr.rel (%p556) target = $region72
        $region71: #{tpu_custom_call.1} parent=67 // pred_region
          %s559 = sand.u32 %s235, 1
          %s560 = scalar_lea.sflag [#allocation4], %s559
          %s561 = sand.u32 %s235, 1
          %s562 = smul.addr %s561, 8
          %s563 = scalar_lea.vmem [#allocation3], %s562
          %565 = dma.done %s560, 128
        $region72: #{tpu_custom_call.1} parent=67 // pred_fallthru
          _
        // Predicated region
        $region73: #{tpu_custom_call.1} parent=67 // pred_check
          %p566 = pneg %p276
        $region74: #{tpu_custom_call.1} parent=67 // pred_check_branch
          %568 = sbr.rel (%p566) target = $region76
        $region75: #{tpu_custom_call.1} parent=67 // pred_region
          %p569 = scmp.lt.s32.totalorder %s28, 1
          %s570 = scalar_select %p569, %s28, 1
          %s571 = smul.addr %s570, 8
          %s572 = scalar_lea.vmem %s10, %s571
        $region76: #{tpu_custom_call.1} parent=67 // pred_fallthru
          _
      $region68: #{tpu_custom_call.1} parent=5 // pred_fallthru
        _
    $region6: #{tpu_custom_call.1} parent=1 // loop_footer
      %s26 = sadd.s32 1, %s22
    $region7: #{tpu_custom_call.1} parent=1 // loop_footer_branch
      %21 = sbr.rel target = $region3
    $region8: #{tpu_custom_call.1} parent=1 // loop_exit
      _
    %573 = vsyncpa [#allocation4], 1
    %s574 = scalar_lea.sflag [#allocation4], 1
    %575 = vsyncpa %s574, 1

</llo_original>
